<compile_context>
chip_gen: v7x
topology: tpu7x:2x2x1
jax: 0.10.0
libtpu: 0.0.40
codegen_flags: <defaults>
</compile_context>

<pallas_src>
import numpy as np
import jax
import jax.numpy as jnp
from jax import lax
from jax.experimental import pallas as pl
from jax.experimental.pallas import tpu as pltpu

# ----- synthetic config (small shapes implied by the module) -----
B = 2           # batch
STATE_N = 8     # env.observation_space['proprio'].shape[0]
HIDDEN = 32     # G.hidden_size
NF = 8          # G.nfilter
VQD = 8         # G.vqD
LCD_HW = 16     # lcd spatial size (16x16)
HW = LCD_HW * LCD_HW
GROUPS = 4      # ResBlock group_size -> nn.GroupNorm(4, C)
EPS = 1e-5      # GroupNorm eps (PyTorch default)

_F32 = jnp.float32
PREC = jax.lax.Precision.HIGHEST                       # explicit, per-dot
TAPS = [(dy, dx) for dy in (-1, 0, 1) for dx in (-1, 0, 1)]   # t = (dy+1)*3+(dx+1)

# pltpu.roll direction: with jnp.roll semantics (y[p] == x[p - shift]) we need
# shift = -offset.  A tiny self-check in __main__ flips this sign if the
# lowering uses the opposite convention, so correctness never depends on it.
_ROLL_SIGN = -1


# ============================ in-kernel building blocks ============================

def _silu(x):
  return x * pl.reciprocal(1.0 + jnp.exp(-x))          # exact (approx=False default)


def _shifted(x, off):
  """x[:, p + off] on the 256-lane frame (wrapped lanes are masked by caller)."""
  if off == 0:
    return x
  return pltpu.roll(x, shift=(_ROLL_SIGN * off) % HW, axis=1)


def _conv3x3(x, w_cat, bias, masks_ref, lvl, sigma):
  """Fused 3x3 conv: 9 rolled+masked copies stacked on sublanes, one MXU dot.

  x      : (B*Cin, 256) frame activation.
  w_cat  : (B*Cout, 9*B*Cin) per-tap block-diagonal weights, tap-concatenated.
  masks_ref[9*lvl + t] : (1, 256) mask encoding both the zero padding at the
      image border and the active-pixel set of resolution level `lvl`, so
      stride-2 convs need no special handling.
  sigma  : frame stride of one grid step at this level (1, 2 or 4).
  """
  pieces = []
  for t, (dy, dx) in enumerate(TAPS):
    sh = _shifted(x, sigma * (dy * LCD_HW + dx))
    pieces.append(sh * masks_ref[9 * lvl + t])
  stack = jnp.concatenate(pieces, axis=0)                       # (9*B*Cin, 256)
  return jnp.dot(w_cat, stack, precision=PREC,
                 preferred_element_type=_F32) + bias


def _conv_in(x, w0_ref, bias, masks_ref):
  """First conv (Cin=1): per-tap accumulate (2-row pieces are not sublane
  aligned, so stacking buys nothing for the MXU here).  Accumulator starts
  at the bias."""
  acc = bias                                                    # (B*NF, 1)
  for t, (dy, dx) in enumerate(TAPS):
    sm = _shifted(x, dy * LCD_HW + dx) * masks_ref[t]
    acc = acc + jnp.dot(w0_ref[t], sm, precision=PREC,
                        preferred_element_type=_F32)
  return acc


def _gn_silu(x, gamma, beta, A, act):
  """GroupNorm (per batch element / group) + affine + SiLU on the frame.

  A   : (B*C, B*C) group-average matrix with 1/(Cg * active_count) folded in.
  act : (1, 256) active-pixel mask of the current level (None at full res).
  """
  xm = x if act is None else x * act
  s = jnp.sum(xm, axis=1, keepdims=True)                        # (B*C, 1)
  mean = jnp.dot(A, s, precision=PREC, preferred_element_type=_F32)
  d = x - mean
  dm = d if act is None else d * act
  q = jnp.sum(dm * dm, axis=1, keepdims=True)
  var = jnp.dot(A, q, precision=PREC, preferred_element_type=_F32)   # biased var
  y = d * lax.rsqrt(var + EPS) * gamma + beta
  return _silu(y)


def _resblock(x, semb, wcats_ref, wi, cols_ref, ci, embw, A, masks_ref, lvl, sigma, act):
  h = _gn_silu(x, cols_ref[ci + 0], cols_ref[ci + 1], A, act)           # GN -> SiLU
  h = _conv3x3(h, wcats_ref[wi], cols_ref[ci + 2], masks_ref, lvl, sigma)
  eo = jnp.dot(embw, semb, precision=PREC,
               preferred_element_type=_F32) + cols_ref[ci + 3]          # Linear(SiLU(emb))
  h = _gn_silu(h + eo, cols_ref[ci + 4], cols_ref[ci + 5], A, act)      # GN(h+emb) -> SiLU
  # TODO(synk): Dropout(p=0.0) in the reference ResBlock is identity — omitted.
  h = _conv3x3(h, wcats_ref[wi + 1], cols_ref[ci + 6], masks_ref, lvl, sigma)
  return x + h                                                          # fused skip


def _encoder_kernel(state_ref, lcd_ref, mlp_ref, misc_ref, wcats_ref, w0_ref,
                    cols_ref, masks_ref, o_ref):
  # ---- state_embed: Linear -> ReLU -> Linear -> ReLU -> Linear (block-diag over batch) ----
  u = state_ref[...]                                            # (B*STATE_N, 1)
  h = jnp.maximum(jnp.dot(mlp_ref[0][:, :B * STATE_N], u, precision=PREC,
                          preferred_element_type=_F32) + mlp_ref[3][:, :1], 0.0)
  h = jnp.maximum(jnp.dot(mlp_ref[1], h, precision=PREC,
                          preferred_element_type=_F32) + mlp_ref[4][:, :1], 0.0)
  emb = jnp.dot(mlp_ref[2], h, precision=PREC,
                preferred_element_type=_F32) + mlp_ref[5][:, :1]        # (B*HIDDEN, 1)
  semb = _silu(emb)                                             # SiLU(emb) computed once

  A16 = misc_ref[0][:, :B * NF]
  A8 = misc_ref[1][:, :B * NF]
  A4 = misc_ref[2][:, :B * NF]
  c3w = misc_ref[3][:, :B * NF]
  act8 = masks_ref[9 * 1 + 4]                                   # level-8 active pixels
  act4 = masks_ref[9 * 2 + 4]                                   # level-4 active pixels

  # ---- seq (all activations live in the (B*C, 256) full-resolution frame) ----
  x = _conv_in(lcd_ref[...], w0_ref, cols_ref[0], masks_ref)                    # Conv3x3(1->nf)
  x = _resblock(x, semb, wcats_ref, 0, cols_ref, 1, misc_ref[4], A16, masks_ref, 0, 1, None)
  x = _conv3x3(x, wcats_ref[2], cols_ref[8], masks_ref, 0, 1)                   # Conv3x3 /2
  x = _resblock(x, semb, wcats_ref, 3, cols_ref, 9, misc_ref[5], A8, masks_ref, 1, 2, act8)
  x = _conv3x3(x, wcats_ref[5], cols_ref[16], masks_ref, 1, 2)                  # Conv3x3 /2
  x = _resblock(x, semb, wcats_ref, 6, cols_ref, 17, misc_ref[6], A4, masks_ref, 2, 4, act4)
  o_ref[...] = jnp.dot(c3w, x, precision=PREC,
                       preferred_element_type=_F32) + cols_ref[24]              # 1x1 conv


# ============================ wrapper (single pallas_call) ============================

def encoder_forward(state, lcd, kp):
  state_col = state.reshape(B * STATE_N, 1)
  lcd2 = lcd.reshape(B, HW)
  inputs = [state_col, lcd2] + list(kp)
  out = pl.pallas_call(
      _encoder_kernel,
      out_shape=jax.ShapeDtypeStruct((B * VQD, HW), jnp.float32),
      in_specs=[pl.BlockSpec(memory_space=pltpu.MemorySpace.VMEM)] * len(inputs),
      out_specs=pl.BlockSpec(memory_space=pltpu.MemorySpace.VMEM),
      cost_estimate=pl.CostEstimate(flops=10_000_000, transcendentals=25_000,
                                    bytes_accessed=300_000),
  )(*inputs)
  # Lane-dense (B*vqD, 256) frame -> pick the level-4 pixels (h, w multiples of 4).
  return out.reshape(B, VQD, LCD_HW, LCD_HW)[:, :, ::4, ::4]


# ============================ host-side kernel-layout parameters ============================

def build_kernel_params(P):
  f32 = np.float32

  def bd(op):
    return np.kron(np.eye(B, dtype=f32), np.asarray(op, f32))

  def col(v):
    return np.tile(np.asarray(v, f32), B).reshape(-1, 1)

  def pad_cols(a, n):
    a = np.asarray(a, f32)
    out = np.zeros((a.shape[0], n), f32)
    out[:, :a.shape[1]] = a
    return out

  def conv_wcat(w):                   # (3,3,Cin,Cout) -> (B*Cout, 9*B*Cin)
    w = np.asarray(w, f32)
    return np.concatenate([bd(w[dy + 1, dx + 1].T) for (dy, dx) in TAPS], axis=1)

  # --- MLP (block-diagonal over batch), stacked: (6, 64, 64) ---
  w1, b1, w2, b2, w3, b3 = P['mlp']
  mlp = np.stack([pad_cols(bd(np.asarray(w1, f32).T), B * HIDDEN),
                  pad_cols(bd(np.asarray(w2, f32).T), B * HIDDEN),
                  pad_cols(bd(np.asarray(w3, f32).T), B * HIDDEN),
                  pad_cols(col(b1), B * HIDDEN),
                  pad_cols(col(b2), B * HIDDEN),
                  pad_cols(col(b3), B * HIDDEN)])

  # --- group-average matrices with 1/(Cg * active_count) folded in ---
  cg = NF // GROUPS
  n = B * NF
  gm = np.zeros((n, n), f32)
  for i in range(n):
    for j in range(n):
      if i // cg == j // cg:
        gm[i, j] = 1.0 / cg
  A16, A8, A4 = gm / 256.0, gm / 64.0, gm / 16.0

  # --- misc (16-row mats), stacked: (7, 16, 64) ---
  c3w = bd(np.asarray(P['c3_w'], f32)[0, 0].T)
  misc = np.stack([pad_cols(A16, 64), pad_cols(A8, 64), pad_cols(A4, 64),
                   pad_cols(c3w, 64),
                   pad_cols(bd(np.asarray(P['rb1']['emb_w'], f32).T), 64),
                   pad_cols(bd(np.asarray(P['rb2']['emb_w'], f32).T), 64),
                   pad_cols(bd(np.asarray(P['rb3']['emb_w'], f32).T), 64)])

  # --- fused per-conv tap weights: (8, 16, 144) ---
  wcats = np.stack([conv_wcat(P['rb1']['conv1_w']), conv_wcat(P['rb1']['conv2_w']),
                    conv_wcat(P['c1_w']),
                    conv_wcat(P['rb2']['conv1_w']), conv_wcat(P['rb2']['conv2_w']),
                    conv_wcat(P['c2_w']),
                    conv_wcat(P['rb3']['conv1_w']), conv_wcat(P['rb3']['conv2_w'])])

  # --- first conv (Cin=1) per-tap weights: (9, 16, 2) ---
  c0 = np.asarray(P['c0_w'], f32)
  w0taps = np.stack([bd(c0[dy + 1, dx + 1].T) for (dy, dx) in TAPS])

  # --- bias / gamma / beta columns, stacked: (25, 16, 1) ---
  def rbcols(p):
    return [col(p['gn1_g']), col(p['gn1_b']), col(p['conv1_b']), col(p['emb_b']),
            col(p['gn2_g']), col(p['gn2_b']), col(p['conv2_b'])]
  cols = ([col(P['c0_b'])] + rbcols(P['rb1']) + [col(P['c1_b'])] + rbcols(P['rb2'])
          + [col(P['c2_b'])] + rbcols(P['rb3']) + [col(P['c3_b'])])
  cols = np.stack(cols)                                             # (25, 16, 1)

  # --- tap masks per level (zero-pad at border AND active-pixel set): (27, 1, 256) ---
  def tap_masks(sigma):
    m = np.zeros((9, HW), f32)
    for t, (dy, dx) in enumerate(TAPS):
      for h in range(LCD_HW):
        for w in range(LCD_HW):
          if h % sigma == 0 and w % sigma == 0:
            sy, sx = h + sigma * dy, w + sigma * dx
            if 0 <= sy < LCD_HW and 0 <= sx < LCD_HW:
              m[t, h * LCD_HW + w] = 1.0
    return m
  masks = np.concatenate([tap_masks(1), tap_masks(2), tap_masks(4)], axis=0)
  masks = masks.reshape(27, 1, HW)

  return [jnp.asarray(a) for a in (mlp, misc, wcats, w0taps, cols, masks)]


# ============================ params (deterministic, synthetic) ============================

def init_params(key):
  kit = iter(jax.random.split(key, 40))

  def dense(fan_in, fan_out):
    s = 1.0 / np.sqrt(fan_in)
    w = jax.random.uniform(next(kit), (fan_in, fan_out), jnp.float32, -s, s)
    b = jax.random.uniform(next(kit), (fan_out,), jnp.float32, -s, s)
    return w, b

  def conv(kh, kw, cin, cout):
    s = 1.0 / np.sqrt(kh * kw * cin)
    w = jax.random.uniform(next(kit), (kh, kw, cin, cout), jnp.float32, -s, s)
    b = jax.random.uniform(next(kit), (cout,), jnp.float32, -s, s)
    return w, b

  def rb(c, emb_c):
    c1w, c1b = conv(3, 3, c, c)
    ew, eb = dense(emb_c, c)
    # TODO(synk): the original repo zero-inits this second conv (zero_module); synthetic random init used here.
    c2w, c2b = conv(3, 3, c, c)
    return dict(gn1_g=jnp.ones((c,), jnp.float32), gn1_b=jnp.zeros((c,), jnp.float32),
                conv1_w=c1w, conv1_b=c1b, emb_w=ew, emb_b=eb,
                gn2_g=jnp.ones((c,), jnp.float32), gn2_b=jnp.zeros((c,), jnp.float32),
                conv2_w=c2w, conv2_b=c2b)

  w1, b1 = dense(STATE_N, HIDDEN)
  w2, b2 = dense(HIDDEN, HIDDEN)
  w3, b3 = dense(HIDDEN, HIDDEN)
  c0w, c0b = conv(3, 3, 1, NF)
  rb1 = rb(NF, HIDDEN)
  c1w, c1b = conv(3, 3, NF, NF)
  rb2 = rb(NF, HIDDEN)
  c2w, c2b = conv(3, 3, NF, NF)
  rb3 = rb(NF, HIDDEN)
  c3w, c3b = conv(1, 1, NF, VQD)
  return dict(mlp=(w1, b1, w2, b2, w3, b3),
              c0_w=c0w, c0_b=c0b, rb1=rb1, c1_w=c1w, c1_b=c1b,
              rb2=rb2, c2_w=c2w, c2_b=c2b, rb3=rb3, c3_w=c3w, c3_b=c3b)


# ============================ pure-JAX reference (for verification) ============================

def _ref_conv(x, w, b, stride, pad):
  y = lax.conv_general_dilated(x, w, (stride, stride), [(pad, pad), (pad, pad)],
                               dimension_numbers=('NHWC', 'HWIO', 'NHWC'),
                               precision=PREC)
  return y + b.reshape(1, 1, 1, -1)


def _ref_gn(x, gamma, beta, groups):
  Bn, H, W, C = x.shape
  xg = x.reshape(Bn, H, W, groups, C // groups)
  mean = xg.mean(axis=(1, 2, 4), keepdims=True)
  var = ((xg - mean) ** 2).mean(axis=(1, 2, 4), keepdims=True)
  xn = ((xg - mean) / jnp.sqrt(var + EPS)).reshape(Bn, H, W, C)
  return xn * gamma.reshape(1, 1, 1, C) + beta.reshape(1, 1, 1, C)


def _ref_resblock(x, emb, p):
  h = jax.nn.silu(_ref_gn(x, p['gn1_g'], p['gn1_b'], GROUPS))
  h = _ref_conv(h, p['conv1_w'], p['conv1_b'], 1, 1)
  eo = jnp.dot(jax.nn.silu(emb), p['emb_w'], precision=PREC) + p['emb_b']
  h = h + eo[:, None, None, :]
  h = jax.nn.silu(_ref_gn(h, p['gn2_g'], p['gn2_b'], GROUPS))
  h = _ref_conv(h, p['conv2_w'], p['conv2_b'], 1, 1)
  return x + h


def ref_encoder(state, lcd, P):
  w1, b1, w2, b2, w3, b3 = P['mlp']
  h = jnp.maximum(jnp.dot(state, w1, precision=PREC) + b1, 0.0)
  h = jnp.maximum(jnp.dot(h, w2, precision=PREC) + b2, 0.0)
  emb = jnp.dot(h, w3, precision=PREC) + b3
  x = lcd[:, :, :, None]
  x = _ref_conv(x, P['c0_w'], P['c0_b'], 1, 1)
  x = _ref_resblock(x, emb, P['rb1'])
  x = _ref_conv(x, P['c1_w'], P['c1_b'], 2, 1)
  x = _ref_resblock(x, emb, P['rb2'])
  x = _ref_conv(x, P['c2_w'], P['c2_b'], 2, 1)
  x = _ref_resblock(x, emb, P['rb3'])
  x = _ref_conv(x, P['c3_w'], P['c3_b'], 1, 0)
  return jnp.transpose(x, (0, 3, 1, 2))


# ============================ main ============================

if __name__ == "__main__":
  # pltpu.roll direction self-check (expects jnp.roll semantics; adapts if not).
  def _roll_probe():
    def k(x_ref, o_ref):
      o_ref[...] = pltpu.roll(x_ref[...], shift=1, axis=1)
    x = jnp.tile(jnp.arange(128, dtype=jnp.float32)[None, :], (8, 1))
    y = pl.pallas_call(k, out_shape=jax.ShapeDtypeStruct((8, 128), jnp.float32))(x)
    return -1 if float(np.asarray(y)[0, 1]) == 0.0 else 1

  _ROLL_SIGN = _roll_probe()

  key = jax.random.PRNGKey(0)
  kparam, ks, kl = jax.random.split(key, 3)
  P = init_params(kparam)
  state = jax.random.normal(ks, (B, STATE_N), jnp.float32)        # batch['proprio']
  lcd = jax.random.uniform(kl, (B, LCD_HW, LCD_HW), jnp.float32)  # batch['lcd']

  KP = build_kernel_params(P)
  fwd = jax.jit(encoder_forward)
  out = jax.block_until_ready(fwd(state, lcd, KP))

  ref = jax.block_until_ready(ref_encoder(state, lcd, P))
  assert out.shape == (B, VQD, LCD_HW // 4, LCD_HW // 4), out.shape
  np.testing.assert_allclose(np.asarray(out), np.asarray(ref), rtol=1e-4, atol=1e-4)
  print("KERNEL_OK")
</pallas_src>

<mosaic_0001>
module attributes {stable_mosaic.version = 11 : i64} {
  func.func @k(%arg0: memref<8x128xf32, #tpu.memory_space<vmem>>, %arg1: memref<8x128xf32, #tpu.memory_space<vmem>>) attributes {dimension_semantics = [], scalar_prefetch = 0 : i64, scratch_operands = 0 : i64, tpu.core_type = #tpu.core_type<tc>} {
    %c0 = arith.constant 0 : index
    %c0_0 = arith.constant 0 : index
    %0 = vector.load %arg0[%c0, %c0_0] : memref<8x128xf32, #tpu.memory_space<vmem>>, vector<8x128xf32>
    %c1_i32 = arith.constant 1 : i32
    %1 = tpu.dynamic_rotate %0 by %c1_i32 dim 1 : vector<8x128xf32>, i32 -> vector<8x128xf32>
    %c0_1 = arith.constant 0 : index
    %c0_2 = arith.constant 0 : index
    %2 = vector.load %arg1[%c0_1, %c0_2] : memref<8x128xf32, #tpu.memory_space<vmem>>, vector<8x128xf32>
    tpu.vector_store %arg1[%c0_1, %c0_2], %1 {strides = array<i32>} : memref<8x128xf32, #tpu.memory_space<vmem>>, vector<8x128xf32>,
    return
  }
}

</mosaic_0001>

<llo_original>
// kernel: tpu_custom_call.1
$region0: #{tpu_custom_call.1}
  #allocation0 [shape = 'u32[]', space=smem, size = 0x4, offset = 0x4, fixed_abs, tag = 'smem constant byte address 0x4 - core index']
  #allocation1 [shape = 'u32[144,128]{1,0:T(1,128)}', space=vmem, size = 0x12000, scoped, tag = 'internal scratch']
  %s0 = inlined_call_operand.hbm [shape: f32[8,128], index: 0, kind: input, shape index: {}]
  %s1 = inlined_call_operand.hbm [shape: f32[8,128], index: 1, kind: output, shape index: {}]
  %s2 = sld [smem:[#allocation0]]
  $region18: #{tpu_custom_call.1} parent=0
    _
  %s4 = ssub.s32 1, %s2
  %s5 = scalar_select 0, %s4, %s2
  $region1: #{tpu_custom_call.1} parent=0
    #allocation2 [shape = 'u8[4096]{0}', space=vmem, size = 0x1000, scoped, tag = 'input window, operand 0, single buffered']
    #allocation3 [shape = 's32[1]{0}', space=sflag, size = 0x4, scoped, tag = 'scoped memory for tpu_custom_call.1']
    #allocation4 [shape = 's32[1]{0}', space=sflag, size = 0x4, scoped, tag = 'scoped memory for tpu_custom_call.1']
    #allocation5 [shape = 'u8[4096]{0}', space=vmem, size = 0x1000, scoped, tag = 'output window, operand 0, single buffered']
    %6 = vsyncpa [#allocation3], 0
    %7 = vsyncpa [#allocation4], 0
    // Predicated region
    $region2: #{tpu_custom_call.1} parent=1 // pred_check
      _
    $region3: #{tpu_custom_call.1} parent=1 // pred_check_branch
      %9 = sbr.rel (0) target = $region5
    $region4: #{tpu_custom_call.1} parent=1 // pred_region
      %s11 = ssub.s32 128, 128
      %12 = vsyncadd [#allocation3], %s11
      %s14 = sshll.u32 [#allocation2], 4
      %s15 = int_to_ptr.vmem [resolvable:$true] %s14
      %17 = dma.hbm_to_vmem [thread:$0]  %s0, 128, %s15, [#allocation3]
    $region5: #{tpu_custom_call.1} parent=1 // pred_fallthru
      _
    // Predicated region
    $region6: #{tpu_custom_call.1} parent=1 // pred_check
      _
    $region7: #{tpu_custom_call.1} parent=1 // pred_check_branch
      %19 = sbr.rel (0) target = $region9
    $region8: #{tpu_custom_call.1} parent=1 // pred_region
      %20 = dma.done [#allocation3], 128
    $region9: #{tpu_custom_call.1} parent=1 // pred_fallthru
      _
    %v21 = vld [vmem:[#allocation2] sm:$0xff]
    %22 = vrot.lane.b32.xlu0 %v21, 1
    %v23 = vpop.permute.xlu0 %22
    %24 = vst [vmem:[#allocation5] sm:$0xff] %v23
    // Predicated region
    $region10: #{tpu_custom_call.1} parent=1 // pred_check
      _
    $region11: #{tpu_custom_call.1} parent=1 // pred_check_branch
      %26 = sbr.rel (0) target = $region13
    $region12: #{tpu_custom_call.1} parent=1 // pred_region
      %s28 = ssub.s32 128, 128
      %29 = vsyncadd [#allocation4], %s28
      %s31 = sshll.u32 [#allocation5], 4
      %s32 = int_to_ptr.vmem [resolvable:$true] %s31
      %34 = dma.vmem_to_hbm [thread:$0]  %s32, 128, %s1, [#allocation4]
    $region13: #{tpu_custom_call.1} parent=1 // pred_fallthru
      _
    // Predicated region
    $region14: #{tpu_custom_call.1} parent=1 // pred_check
      _
    $region15: #{tpu_custom_call.1} parent=1 // pred_check_branch
      %36 = sbr.rel (0) target = $region17
    $region16: #{tpu_custom_call.1} parent=1 // pred_region
      %37 = dma.done [#allocation4], 128
    $region17: #{tpu_custom_call.1} parent=1 // pred_fallthru
      _
    %38 = vsyncpa [#allocation3], 1
    %39 = vsyncpa [#allocation4], 1

</llo_original>
